<compile_context>
chip_gen: v5e
topology: v5e:2x2
jax: 0.10.0
libtpu: 0.0.40
codegen_flags: <defaults>
</compile_context>

<pallas_src>
import jax
import jax.numpy as jnp
from jax.experimental import pallas as pl
from jax.experimental.pallas import tpu as pltpu

# Max columns (N rows of the original problem) per grid step. 1024 lanes keeps
# per-step overhead negligible while the double-buffered tiles stay tiny
# (z tile 32x1024 bf16 = 64 KiB) -- far under even v7x's 64 MiB VMEM.
TILE_N_MAX = 1024


def emission_kernel(zT_ref, mT_ref, b_ref, locT_ref):
    # loc_T = M^T @ z_T + b   (lane-dense along the N axis)
    acc = jnp.dot(mT_ref[...], zT_ref[...], preferred_element_type=jnp.float32)
    locT_ref[...] = (acc + b_ref[...]).astype(locT_ref.dtype)


def prepare_emission_params(c, w, b, compute_dtype=jnp.bfloat16):
    """Fold the circulant layer and the linear head into one (transposed) weight.

    Call ONCE at parameter-prep time (outside any per-step loop / scan).
      c: [z_dim], w: [x_dim, z_dim], b: [x_dim]
    returns m_T: [x_dim, z_dim] (compute_dtype), b_col: [x_dim, 1] (f32)
    """
    n = c.shape[0]
    # Cmat[i, j] = c[(j - i) mod n]  <=>  (z @ Cmat) == circular_conv(c, z)
    idx = (jnp.arange(n)[None, :] - jnp.arange(n)[:, None]) % n
    cmat = c[idx].astype(jnp.float32)                          # [z_dim, z_dim]
    m_fused = cmat @ jnp.transpose(w).astype(jnp.float32)      # [z_dim, x_dim]
    m_T = jnp.transpose(m_fused).astype(compute_dtype)         # [x_dim, z_dim]
    b_col = b.reshape(-1, 1).astype(jnp.float32)               # [x_dim, 1]
    return m_T, b_col


@jax.jit
def emission_model_forward(z_T, m_T, b_col, log_sigma):
    """z_T: [z_dim, N] (all timesteps/batch columns), lane-dense layout.

    Returns (loc_T [x_dim, N] f32, scale scalar).  loc_T is the transpose of
    the original module's loc; content is identical.
    """
    z_dim, N = z_T.shape
    x_dim = m_T.shape[0]

    # Single block for small N, 1024-lane tiles otherwise. No host pad/slice:
    # cdiv grid + Pallas partial-block masking handle the ragged tail.
    tile_n = min(TILE_N_MAX, pl.cdiv(N, 128) * 128)
    grid = (pl.cdiv(N, tile_n),)

    loc_T = pl.pallas_call(
        emission_kernel,
        out_shape=jax.ShapeDtypeStruct((x_dim, N), jnp.float32),
        grid=grid,
        in_specs=[
            pl.BlockSpec((z_dim, tile_n), lambda i: (0, i)),   # column tile of z_T
            pl.BlockSpec((x_dim, z_dim), lambda i: (0, 0)),    # fused weight, VMEM-resident
            pl.BlockSpec((x_dim, 1), lambda i: (0, 0)),        # bias column, VMEM-resident
        ],
        out_specs=pl.BlockSpec((x_dim, tile_n), lambda i: (0, i)),
        compiler_params=pltpu.CompilerParams(
            dimension_semantics=("parallel",)),  # v7x: shard column tiles across both TCs
    )(z_T, m_T, b_col)

    scale = jnp.exp(log_sigma)
    return loc_T, scale


def reference_forward(z_rows, c, w, b, log_sigma):
    """Pure-JAX reference reproducing the PyTorch forward (via FFT)."""
    n = c.shape[0]
    c_fft = jnp.fft.fft(c)
    x_fft = jnp.fft.fft(z_rows, n=n, axis=-1)
    h = jnp.real(jnp.fft.ifft(c_fft * x_fft, axis=-1)).astype(jnp.float32)
    loc = h @ w.T + b
    scale = jnp.exp(log_sigma)
    return loc, scale


if __name__ == "__main__":
    # Shapes consistent with the module: z_dim=32, x_dim=16.
    # The per-timestep [B, z_dim] calls are amortized: T timesteps x B batch
    # stacked into N = T*B columns of a single kernel call.
    T, B, z_dim, x_dim = 32, 8, 32, 16          # N = 256 columns -> grid=(1,)

    key = jax.random.PRNGKey(0)
    k_z, k_c, k_w, k_b = jax.random.split(key, 4)

    z_seq = jax.random.normal(k_z, (T, B, z_dim), dtype=jnp.float32)
    # Parameters (mimicking nn.Parameter / nn.Linear shapes)
    c = jax.random.normal(k_c, (z_dim,), dtype=jnp.float32)              # FFTCirculantLayer.c
    w = jax.random.normal(k_w, (x_dim, z_dim), dtype=jnp.float32) * 0.1  # out.weight
    b = jax.random.normal(k_b, (x_dim,), dtype=jnp.float32) * 0.1        # out.bias
    log_sigma = jnp.float32(0.0)                                          # log_sigma

    z_rows = z_seq.reshape(T * B, z_dim)
    # Production note: the upstream producer of z should emit it directly in
    # the [z_dim, N] (bf16) layout; the transpose/cast here is demo-only glue.
    z_T_bf16 = z_rows.T.astype(jnp.bfloat16)
    z_T_f32 = z_rows.T.astype(jnp.float32)

    loc_ref, scale_ref = reference_forward(z_rows, c, w, b, log_sigma)

    # --- f32 path: exactness of the fused circulant+linear kernel ---
    m_T32, b_col = prepare_emission_params(c, w, b, compute_dtype=jnp.float32)
    loc_T32, scale32 = emission_model_forward(z_T_f32, m_T32, b_col, log_sigma)
    loc_T32 = jax.block_until_ready(loc_T32)
    assert jnp.allclose(loc_T32.T, loc_ref, atol=1e-4, rtol=1e-4)

    # --- bf16 path (production config): halved HBM traffic, f32 accumulation ---
    m_T, b_col = prepare_emission_params(c, w, b, compute_dtype=jnp.bfloat16)
    loc_T, scale = emission_model_forward(z_T_bf16, m_T, b_col, log_sigma)
    loc_T = jax.block_until_ready(loc_T)
    scale = jax.block_until_ready(scale)

    loc = loc_T.T                                  # back to [N, x_dim] for the check
    assert loc.shape == (T * B, x_dim) and scale.shape == ()
    assert jnp.allclose(loc, loc_ref, atol=5e-2, rtol=5e-2)   # bf16 inputs -> looser tol
    assert jnp.allclose(scale, scale_ref)

    # Per-timestep view, matching the original forward's [B, z_dim] -> [B, x_dim]:
    loc_seq = loc.reshape(T, B, x_dim)
    assert loc_seq.shape == (T, B, x_dim)

    print("KERNEL_OK")
</pallas_src>

<mosaic_0001>
module attributes {stable_mosaic.version = 11 : i64} {
  func.func @emission_kernel(%arg0: i32, %arg1: memref<32x256xf32, #tpu.memory_space<vmem>>, %arg2: memref<16x32xf32, #tpu.memory_space<vmem>>, %arg3: memref<16x1xf32, #tpu.memory_space<vmem>>, %arg4: memref<16x256xf32, #tpu.memory_space<vmem>>) attributes {dimension_semantics = [#tpu.dimension_semantics<parallel>], iteration_bounds = array<i64: 1>, scalar_prefetch = 0 : i64, scratch_operands = 0 : i64, tpu.core_type = #tpu.core_type<tc>, window_params = [{transform_indices = @transform_0, window_bounds = array<i64: 32, 256>}, {pipeline_mode = #tpu.pipeline_mode<synchronous>, transform_indices = @transform_1, window_bounds = array<i64: 16, 32>}, {pipeline_mode = #tpu.pipeline_mode<synchronous>, transform_indices = @transform_2, window_bounds = array<i64: 16, 1>}, {transform_indices = @transform_3, window_bounds = array<i64: 16, 256>}]} {
    %c0 = arith.constant 0 : index
    %c0_0 = arith.constant 0 : index
    %0 = vector.load %arg2[%c0, %c0_0] : memref<16x32xf32, #tpu.memory_space<vmem>>, vector<16x32xf32>
    %c0_1 = arith.constant 0 : index
    %c0_2 = arith.constant 0 : index
    %1 = vector.load %arg1[%c0_1, %c0_2] : memref<32x256xf32, #tpu.memory_space<vmem>>, vector<32x256xf32>
    %cst = arith.constant dense<0.000000e+00> : vector<16x256xf32>
    %2 = tpu.matmul %0, %1, %cst {dimension_numbers = #tpu.dot_dimension_numbers<[1], [0], [0], [1], [0, 0, 1, 1], [], []>} : vector<16x32xf32>, vector<32x256xf32>, vector<16x256xf32> -> vector<16x256xf32>
    %c0_3 = arith.constant 0 : index
    %c0_4 = arith.constant 0 : index
    %3 = vector.load %arg3[%c0_3, %c0_4] : memref<16x1xf32, #tpu.memory_space<vmem>>, vector<16x1xf32>
    %4 = vector.broadcast %3 : vector<16x1xf32> to vector<16x256xf32>
    %5 = arith.addf %2, %4 : vector<16x256xf32>
    %c0_5 = arith.constant 0 : index
    %c0_6 = arith.constant 0 : index
    %6 = vector.load %arg4[%c0_5, %c0_6] : memref<16x256xf32, #tpu.memory_space<vmem>>, vector<16x256xf32>
    tpu.vector_store %arg4[%c0_5, %c0_6], %5 {strides = array<i32>} : memref<16x256xf32, #tpu.memory_space<vmem>>, vector<16x256xf32>,
    return
  }
  func.func @transform_0(%arg0: i32) -> (i32, i32) {
    %c0_i32 = arith.constant 0 : i32
    %c0_i32_0 = arith.constant 0 : i32
    return %c0_i32, %arg0 : i32, i32
  }
  func.func @transform_1(%arg0: i32) -> (i32, i32) {
    %c0_i32 = arith.constant 0 : i32
    %c0_i32_0 = arith.constant 0 : i32
    %c0_i32_1 = arith.constant 0 : i32
    return %c0_i32, %c0_i32_0 : i32, i32
  }
  func.func @transform_2(%arg0: i32) -> (i32, i32) {
    %c0_i32 = arith.constant 0 : i32
    %c0_i32_0 = arith.constant 0 : i32
    %c0_i32_1 = arith.constant 0 : i32
    return %c0_i32, %c0_i32_0 : i32, i32
  }
  func.func @transform_3(%arg0: i32) -> (i32, i32) {
    %c0_i32 = arith.constant 0 : i32
    %c0_i32_0 = arith.constant 0 : i32
    return %c0_i32, %arg0 : i32, i32
  }
}

</mosaic_0001>

<llo_original>
// kernel: emission_model_forward.1
$region0: #{emission_model_forward.1}
  #allocation0 [shape = 'u32[]', space=smem, size = 0x4, offset = 0x4, fixed_abs, tag = 'smem constant byte address 0x4 - core index']
  #allocation1 [shape = 'u32[72,128]{1,0:T(1,128)}', space=vmem, size = 0x9000, scoped, tag = 'internal scratch']
  %s0 = inlined_call_operand.hbm [shape: f32[32,256], index: 0, kind: input, shape index: {}]
  %s1 = inlined_call_operand.vmem [shape: f32[16,32], index: 1, kind: input, shape index: {}]
  %s2 = inlined_call_operand.vmem [shape: f32[16,1], index: 2, kind: input, shape index: {}]
  %s3 = inlined_call_operand.hbm [shape: f32[16,256], index: 3, kind: output, shape index: {}]
  %s4 = sld [smem:[#allocation0]]
  $region26: #{emission_model_forward.1} parent=0
    _
  %s6 = ssub.s32 1, %s4
  %s7 = scalar_select 0, %s6, %s4
  $region1: #{emission_model_forward.1} parent=0
    #allocation2 [shape = 'u8[32768]{0}', space=vmem, size = 0x8000, scoped, tag = 'input window, operand 0, single buffered']
    #allocation3 [shape = 's32[1]{0}', space=sflag, size = 0x4, scoped, tag = 'scoped memory for emission_model_forward.1']
    #allocation4 [shape = 's32[1]{0}', space=sflag, size = 0x4, scoped, tag = 'scoped memory for emission_model_forward.1']
    #allocation5 [shape = 'u8[16384]{0}', space=vmem, size = 0x4000, scoped, tag = 'output window, operand 0, single buffered']
    %8 = vsyncpa [#allocation3], 0
    %9 = vsyncpa [#allocation4], 0
    // Predicated region
    $region2: #{emission_model_forward.1} parent=1 // pred_check
      _
    $region3: #{emission_model_forward.1} parent=1 // pred_check_branch
      %11 = sbr.rel (0) target = $region5
    $region4: #{emission_model_forward.1} parent=1 // pred_region
      %13 = vsyncadd [#allocation3], 0
      %s14 = sshll.u32 %s0, 4
      %s15 = int_to_ptr.hbm [resolvable:$true] %s14
      %s16 = sshll.u32 [#allocation2], 4
      %s17 = int_to_ptr.vmem [resolvable:$true] %s16
      %22 = dma.hbm_to_vmem [thread:$0]  %s15, 1024, %s17, [#allocation3], 256, 256, 16
    $region5: #{emission_model_forward.1} parent=1 // pred_fallthru
      _
    // Predicated region
    $region6: #{emission_model_forward.1} parent=1 // pred_check
      _
    $region7: #{emission_model_forward.1} parent=1 // pred_check_branch
      %24 = sbr.rel (0) target = $region9
    $region8: #{emission_model_forward.1} parent=1 // pred_region
      _
    $region9: #{emission_model_forward.1} parent=1 // pred_fallthru
      _
    // Predicated region
    $region10: #{emission_model_forward.1} parent=1 // pred_check
      _
    $region11: #{emission_model_forward.1} parent=1 // pred_check_branch
      %26 = sbr.rel (0) target = $region13
    $region12: #{emission_model_forward.1} parent=1 // pred_region
      _
    $region13: #{emission_model_forward.1} parent=1 // pred_fallthru
      _
    // Predicated region
    $region14: #{emission_model_forward.1} parent=1 // pred_check
      _
    $region15: #{emission_model_forward.1} parent=1 // pred_check_branch
      %28 = sbr.rel (0) target = $region17
    $region16: #{emission_model_forward.1} parent=1 // pred_region
      %30 = dma.done [#allocation3], 1024
    $region17: #{emission_model_forward.1} parent=1 // pred_fallthru
      _
    %v31 = vld [vmem:[%s1] sm:$0xff]
    %v32 = vld [vmem:[%s1 + $0x8] sm:$0xff]
    %v33 = vld [vmem:[#allocation2] sm:$0xff]
    %v34 = vld [vmem:[#allocation2 + $0x8] sm:$0xff]
    %v35 = vld [vmem:[#allocation2 + $0x10] sm:$0xff]
    %v36 = vld [vmem:[#allocation2 + $0x18] sm:$0xff]
    %v37 = vld [vmem:[#allocation2 + $0x20] sm:$0xff]
    %v38 = vld [vmem:[#allocation2 + $0x28] sm:$0xff]
    %v39 = vld [vmem:[#allocation2 + $0x30] sm:$0xff]
    %v40 = vld [vmem:[#allocation2 + $0x38] sm:$0xff]
    %v41 = vld [vmem:[%s2] sm:$0xff]
    %v42 = vld [vmem:[%s2 + $0x8] sm:$0xff]
    %44 = vset.pattern.permute.xlu0 0
    %45 = vperm.xlu0 %44, %v41
    %v46 = vpop.permute.xlu0 %45
    %49 = vset.pattern.permute.xlu0 0
    %50 = vperm.xlu0 %49, %v42
    %v51 = vpop.permute.xlu0 %50
    %vm53 = vcmask 261120
    %v55 = vsel %vm53, %v31, 0
    %v58 = vsel %vm53, %v32, 0
    %60 = vmatpush.msra.mxu0 0.0
    %61 = vmatpush.msra.mxu0 0.0
    %62 = vmatpush.msra.mxu0 0.0
    %63 = vmatpush.msra.mxu0 0.0
    %64 = vmatpush.msra.mxu0 0.0
    %65 = vmatpush.msra.mxu0 0.0
    %66 = vmatpush.msra.mxu0 0.0
    %67 = vmatpush.msra.mxu0 0.0
    %68 = vmatpush.msra.mxu0 0.0
    %69 = vmatpush.msra.mxu0 0.0
    %70 = vmatpush.msra.mxu0 0.0
    %71 = vmatpush.msra.mxu0 0.0
    %72 = vmatpush.msra.mxu0 %v39
    %73 = vmatpush.msra.mxu0 %v37
    %74 = vmatpush.msra.mxu0 %v35
    %75 = vmatpush.msra.mxu0 %v33
    %76 = vmatmul.f32.gmra.mxu0 %v55
    %v77 = vpop.f32.mrf.mxu0
    %v78 = vadd.f32 %v46, %v77
    %79 = vmatmul.f32.gmra.mxu0 %v58
    %v80 = vpop.f32.mrf.mxu0
    %v81 = vadd.f32 %v51, %v80
    %82 = vdwg.mxu0
    %83 = vmatpush.msra.mxu0 0.0
    %84 = vmatpush.msra.mxu0 0.0
    %85 = vmatpush.msra.mxu0 0.0
    %86 = vmatpush.msra.mxu0 0.0
    %87 = vmatpush.msra.mxu0 0.0
    %88 = vmatpush.msra.mxu0 0.0
    %89 = vmatpush.msra.mxu0 0.0
    %90 = vmatpush.msra.mxu0 0.0
    %91 = vmatpush.msra.mxu0 0.0
    %92 = vmatpush.msra.mxu0 0.0
    %93 = vmatpush.msra.mxu0 0.0
    %94 = vmatpush.msra.mxu0 0.0
    %95 = vmatpush.msra.mxu0 %v40
    %96 = vmatpush.msra.mxu0 %v38
    %97 = vmatpush.msra.mxu0 %v36
    %98 = vmatpush.msra.mxu0 %v34
    %99 = vmatmul.f32.gmra.mxu0 %v55
    %v100 = vpop.f32.mrf.mxu0
    %v101 = vadd.f32 %v46, %v100
    %102 = vmatmul.f32.gmra.mxu0 %v58
    %v103 = vpop.f32.mrf.mxu0
    %v104 = vadd.f32 %v51, %v103
    %105 = vdwg.mxu0
    %106 = vst [vmem:[#allocation5] sm:$0xff] %v78
    %107 = vst [vmem:[#allocation5 + $0x8] sm:$0xff] %v101
    %108 = vst [vmem:[#allocation5 + $0x10] sm:$0xff] %v81
    %109 = vst [vmem:[#allocation5 + $0x18] sm:$0xff] %v104
    // Predicated region
    $region18: #{emission_model_forward.1} parent=1 // pred_check
      _
    $region19: #{emission_model_forward.1} parent=1 // pred_check_branch
      %111 = sbr.rel (0) target = $region21
    $region20: #{emission_model_forward.1} parent=1 // pred_region
      %113 = vsyncadd [#allocation4], 0
      %s114 = sshll.u32 [#allocation5], 4
      %s115 = int_to_ptr.vmem [resolvable:$true] %s114
      %s116 = sshll.u32 %s3, 4
      %s117 = int_to_ptr.hbm [resolvable:$true] %s116
      %122 = dma.vmem_to_hbm [thread:$0]  %s115, 512, %s117, [#allocation4], 256, 256, 16
    $region21: #{emission_model_forward.1} parent=1 // pred_fallthru
      _
    // Predicated region
    $region22: #{emission_model_forward.1} parent=1 // pred_check
      _
    $region23: #{emission_model_forward.1} parent=1 // pred_check_branch
      %124 = sbr.rel (0) target = $region25
    $region24: #{emission_model_forward.1} parent=1 // pred_region
      %126 = dma.done [#allocation4], 512
    $region25: #{emission_model_forward.1} parent=1 // pred_fallthru
      _
    %127 = vsyncpa [#allocation3], 1
    %128 = vsyncpa [#allocation4], 1

</llo_original>
